<compile_context>
chip_gen: v7x
topology: tpu7x:2x2x1
jax: 0.10.0
libtpu: 0.0.40
codegen_flags: <defaults>
</compile_context>

<pallas_src>
import functools
import math

import jax
import jax.numpy as jnp
from jax.experimental import pallas as pl
from jax.experimental.pallas import tpu as pltpu


def _round_up(x, m):
    return (x + m - 1) // m * m


@functools.lru_cache(maxsize=1)
def _multi_tensorcore_chip():
    """True on chips with >1 TensorCore per chip (v7x; v4/v5p megacore)."""
    try:
        kind = jax.devices()[0].device_kind.lower()
    except Exception:
        return False
    return any(tag in kind for tag in ("v7", "7x", "v4", "v5p"))


def _pick_block_b(B, multi_tc):
    if multi_tc:
        # >= 2 grid steps whenever B >= 256 so both TensorCores get batch work.
        if B <= 128:
            return _round_up(B, 8)
        return 128 if B <= 1024 else 256
    # Single-TC chips (v5e / v6e): as few grid steps as possible.
    return _round_up(B, 8) if B <= 512 else 512


def _pick_feature_block(F):
    """Feature-chunk size tk. tk == F means no K-tiling (and no feature pad)."""
    if F <= 4096:
        return F
    # Large feature dim: chunk x / W1 so the double-buffered blocks stay well
    # inside VMEM even on v7x (64 MiB physical, 32 MiB default scoped).
    for tk in (2048, 4096, 1024, 3072, 1536, 512, 2560):
        if F % tk == 0:
            return tk
    return 2048  # no 128-aligned divisor -> wrapper zero-pads F (rare)


def _mlp_kernel(x_ref, w1_ref, b1_ref, w2_ref, b2_ref, w3_ref, b3_ref,
                o_ref, acc_ref):
    """One (batch-tile, feature-chunk) grid step of the fused 3-layer MLP.

    x_ref:   (block_b, tk) f32   -- streamed; cast to bf16 right at the MXU
    w1_ref:  (tk, 512)    bf16   b1_ref: (1, 512) f32
    w2_ref:  (512, 256)   bf16   b2_ref: (1, 256) f32
    w3_ref:  (1, 256)     f32    b3_ref: (1, 1)   f32
    o_ref:   (8, block_b) f32    -- lane-dense row, broadcast over 8 sublanes
    acc_ref: (block_b, 512) f32  -- layer-1 accumulator, persists over k
    """
    k = pl.program_id(1)

    @pl.when(k == 0)
    def _init():
        acc_ref[...] = jnp.zeros_like(acc_ref)

    # Layer 1 partial product: bf16 MXU matmul with f32 accumulation.  The
    # bf16 cast happens here (VPU) so x never makes an extra HBM round-trip.
    acc_ref[...] += jnp.dot(x_ref[...].astype(jnp.bfloat16), w1_ref[...],
                            preferred_element_type=jnp.float32)

    @pl.when(k == pl.num_programs(1) - 1)
    def _finalize():
        h1 = acc_ref[...] + b1_ref[...]
        h1 = jnp.maximum(h1, 0.2 * h1)                       # LeakyReLU(0.2)

        h2 = jnp.dot(h1.astype(jnp.bfloat16), w2_ref[...],
                     preferred_element_type=jnp.float32)
        h2 = h2 + b2_ref[...]
        h2 = jnp.maximum(h2, 0.2 * h2)                       # LeakyReLU(0.2)

        # Layer 3 (256 -> 1): VPU multiply + cross-lane reduce (an N=1 MXU
        # matmul would waste the array), emitted as a lane-dense row.
        logits = jnp.sum(h2 * w3_ref[...], axis=-1)          # (block_b,)
        row = logits[None, :] + b3_ref[...]                  # (1, block_b)
        o_ref[...] = jnp.broadcast_to(row, o_ref.shape).astype(o_ref.dtype)


@functools.partial(jax.jit, static_argnames=("block_b", "feature_block"))
def discriminator_forward(img, w1, b1, w2, b2, w3, b3, *,
                          block_b=None, feature_block=None):
    """img: (B, C, H, W) float32 (NCHW, like PyTorch). Returns validity (B, 1).

    Weights: w1 (F, 512), w2 (512, 256), w3 (256, 1); biases b* shaped (1, out).
    """
    B = img.shape[0]
    F = math.prod(img.shape[1:])
    x = img.reshape(B, F)                      # row-major == torch .view(B, -1)

    H1 = w1.shape[1]                           # 512
    H2 = w2.shape[1]                           # 256

    # --- batch tiling --------------------------------------------------------
    if block_b is None:
        block_b = _pick_block_b(B, _multi_tensorcore_chip())
    if block_b < B:
        # Multi-tile batch: the lane-dense output block needs a 128-aligned
        # tile width; 128-aligned rows also keep x / MXU tiles aligned.
        block_b = max(128, _round_up(block_b, 128))
    else:
        block_b = _round_up(block_b, 8)
    B_pad = _round_up(B, block_b)

    # --- feature (K) tiling --------------------------------------------------
    tk = feature_block if feature_block is not None else _pick_feature_block(F)
    if tk < F:
        tk = _round_up(tk, 128)                # lane-aligned feature chunks
        F_pad = _round_up(F, tk)
    else:
        tk = F_pad = F                         # single chunk == full dim

    # --- operand prep (x stays f32; kernel casts to bf16 at the MXU input) ---
    if B_pad != B or F_pad != F:
        # TODO(synk): only hit when B % block_b != 0 or F has no 128-aligned
        # divisor; this re-materializes x once in HBM.
        x = jnp.pad(x, ((0, B_pad - B), (0, F_pad - F)))
    w1_q = (jnp.pad(w1, ((0, F_pad - F), (0, 0))) if F_pad != F else w1)
    w1_q = w1_q.astype(jnp.bfloat16)
    w2_q = w2.astype(jnp.bfloat16)
    w3_row = w3.reshape(1, H2).astype(jnp.float32)
    b1_f = b1.reshape(1, H1).astype(jnp.float32)
    b2_f = b2.reshape(1, H2).astype(jnp.float32)
    b3_f = b3.reshape(1, 1).astype(jnp.float32)

    n_btiles = B_pad // block_b
    n_ktiles = F_pad // tk
    grid = (n_btiles, n_ktiles)

    # --- explicit VMEM budget (v5e default scoped limit is only ~16 MiB) -----
    vmem_need = (
        2 * block_b * tk * 4        # x chunk (f32), double-buffered
        + 2 * tk * H1 * 2           # W1 chunk (bf16), double-buffered
        + 2 * H1 * H2 * 2           # W2 (bf16)
        + block_b * H1 * 4          # layer-1 accumulator scratch
        + 4 * block_b * H2 * 4      # h1/h2 temporaries headroom
        + 2 * 8 * block_b * 4       # output row slab
        + (4 << 20)                 # misc headroom
    )
    vmem_limit = int(min(max(vmem_need, 32 << 20), 60 << 20))

    out_rows = pl.pallas_call(
        _mlp_kernel,
        out_shape=jax.ShapeDtypeStruct((8, B_pad), jnp.float32),
        grid_spec=pltpu.PrefetchScalarGridSpec(
            num_scalar_prefetch=0,
            grid=grid,
            in_specs=[
                pl.BlockSpec((block_b, tk), lambda i, k: (i, k)),   # x (f32)
                pl.BlockSpec((tk, H1), lambda i, k: (k, 0)),        # W1 (bf16)
                pl.BlockSpec((1, H1), lambda i, k: (0, 0)),         # b1
                pl.BlockSpec((H1, H2), lambda i, k: (0, 0)),        # W2 (bf16)
                pl.BlockSpec((1, H2), lambda i, k: (0, 0)),         # b2
                pl.BlockSpec((1, H2), lambda i, k: (0, 0)),         # w3 row
                pl.BlockSpec((1, 1), lambda i, k: (0, 0)),          # b3
            ],
            out_specs=pl.BlockSpec((8, block_b), lambda i, k: (0, i)),
            scratch_shapes=[pltpu.VMEM((block_b, H1), jnp.float32)],
        ),
        compiler_params=pltpu.CompilerParams(
            dimension_semantics=("parallel", "arbitrary"),
            vmem_limit_bytes=vmem_limit,
        ),
    )(x, w1_q, b1_f, w2_q, b2_f, w3_row, b3_f)

    # Row 0 of the lane-dense slab holds the logits; padded batch rows sliced.
    return out_rows[0, :B].reshape(B, 1)


def _init_linear(key, fan_in, fan_out):
    """PyTorch nn.Linear-style init; weight stored as (in, out) = torch W.T."""
    kw, kb = jax.random.split(key)
    bound = 1.0 / jnp.sqrt(jnp.float32(fan_in))
    w = jax.random.uniform(kw, (fan_in, fan_out), jnp.float32, -bound, bound)
    b = jax.random.uniform(kb, (1, fan_out), jnp.float32, -bound, bound)
    return w, b


def _reference(img, w1, b1, w2, b2, w3, b3):
    """Pure-JAX reference replicating the kernel's bf16 operand quantization."""
    B = img.shape[0]
    x = img.reshape(B, -1)

    def q(v):
        return v.astype(jnp.bfloat16).astype(jnp.float32)

    def leaky(v):
        return jnp.maximum(v, 0.2 * v)

    h1 = leaky(q(x) @ q(w1) + b1)
    h2 = leaky(q(h1) @ q(w2) + b2)
    return h2 @ w3 + b3


if __name__ == "__main__":
    # Small, module-consistent shapes: img_shape = (1, 16, 16) -> 256 features.
    C, H, W = 1, 16, 16
    F = C * H * W

    key = jax.random.PRNGKey(0)
    k_img, k_img2, k1, k2, k3 = jax.random.split(key, 5)

    w1, b1 = _init_linear(k1, F, 512)
    w2, b2 = _init_linear(k2, 512, 256)
    w3, b3 = _init_linear(k3, 256, 1)

    ok = True

    # Run 1: small batch -> single batch tile, single feature chunk.
    B = 16
    img = jax.random.normal(k_img, (B, C, H, W), jnp.float32)
    out = jax.block_until_ready(
        discriminator_forward(img, w1, b1, w2, b2, w3, b3))
    ref = _reference(img, w1, b1, w2, b2, w3, b3)
    ok &= out.shape == (B, 1)
    ok &= bool(jnp.allclose(out, ref, atol=2e-3, rtol=2e-3))

    # Run 2: multi-tile batch path (3 x 128-row tiles).
    B2 = 384
    img2 = jax.random.normal(k_img2, (B2, C, H, W), jnp.float32)
    out2 = jax.block_until_ready(
        discriminator_forward(img2, w1, b1, w2, b2, w3, b3, block_b=128))
    ref2 = _reference(img2, w1, b1, w2, b2, w3, b3)
    ok &= out2.shape == (B2, 1)
    ok &= bool(jnp.allclose(out2, ref2, atol=2e-3, rtol=2e-3))

    # Run 3: force K-tiling (feature-chunk accumulation path, 2 chunks of 128).
    out3 = jax.block_until_ready(
        discriminator_forward(img2, w1, b1, w2, b2, w3, b3,
                              block_b=128, feature_block=128))
    ok &= out3.shape == (B2, 1)
    ok &= bool(jnp.allclose(out3, ref2, atol=2e-3, rtol=2e-3))

    assert ok
    print("KERNEL_OK")
</pallas_src>

<mosaic_0001>
module attributes {stable_mosaic.version = 11 : i64} {
  func.func @_mlp_kernel(%arg0: i32, %arg1: i32, %arg2: memref<16x256xf32, #tpu.memory_space<vmem>>, %arg3: memref<256x512xbf16, #tpu.memory_space<vmem>>, %arg4: memref<1x512xf32, #tpu.memory_space<vmem>>, %arg5: memref<512x256xbf16, #tpu.memory_space<vmem>>, %arg6: memref<1x256xf32, #tpu.memory_space<vmem>>, %arg7: memref<1x256xf32, #tpu.memory_space<vmem>>, %arg8: memref<1x1xf32, #tpu.memory_space<vmem>>, %arg9: memref<8x16xf32, #tpu.memory_space<vmem>>, %arg10: memref<16x512xf32, #tpu.memory_space<vmem>>) attributes {dimension_semantics = [#tpu.dimension_semantics<parallel>, #tpu.dimension_semantics<arbitrary>], iteration_bounds = array<i64: 1, 1>, scalar_prefetch = 0 : i64, scratch_operands = 1 : i64, tpu.core_type = #tpu.core_type<tc>, window_params = [{transform_indices = @transform_0, window_bounds = array<i64: 16, 256>}, {transform_indices = @transform_1, window_bounds = array<i64: 256, 512>}, {pipeline_mode = #tpu.pipeline_mode<synchronous>, transform_indices = @transform_2, window_bounds = array<i64: 1, 512>}, {pipeline_mode = #tpu.pipeline_mode<synchronous>, transform_indices = @transform_3, window_bounds = array<i64: 512, 256>}, {pipeline_mode = #tpu.pipeline_mode<synchronous>, transform_indices = @transform_4, window_bounds = array<i64: 1, 256>}, {pipeline_mode = #tpu.pipeline_mode<synchronous>, transform_indices = @transform_5, window_bounds = array<i64: 1, 256>}, {pipeline_mode = #tpu.pipeline_mode<synchronous>, transform_indices = @transform_6, window_bounds = array<i64: 1, 1>}, {transform_indices = @transform_7, window_bounds = array<i64: 8, 16>}]} {
    %c0_i32 = arith.constant 0 : i32
    %0 = arith.cmpi eq, %arg1, %c0_i32 : i32
    %1 = arith.extui %0 : i1 to i32
    %c0_i32_0 = arith.constant 0 : i32
    %2 = arith.cmpi ne, %1, %c0_i32_0 : i32
    scf.if %2 {
      %cst_10 = arith.constant 0.000000e+00 : f32
      %13 = vector.broadcast %cst_10 : f32 to vector<16x512xf32>
      %c0_11 = arith.constant 0 : index
      %c0_12 = arith.constant 0 : index
      %14 = vector.load %arg10[%c0_11, %c0_12] : memref<16x512xf32, #tpu.memory_space<vmem>>, vector<16x512xf32>
      tpu.vector_store %arg10[%c0_11, %c0_12], %13 {strides = array<i32>} : memref<16x512xf32, #tpu.memory_space<vmem>>, vector<16x512xf32>,
    } else {
    }
    %c0 = arith.constant 0 : index
    %c0_1 = arith.constant 0 : index
    %3 = vector.load %arg10[%c0, %c0_1] : memref<16x512xf32, #tpu.memory_space<vmem>>, vector<16x512xf32>
    %c0_2 = arith.constant 0 : index
    %c0_3 = arith.constant 0 : index
    %4 = vector.load %arg2[%c0_2, %c0_3] : memref<16x256xf32, #tpu.memory_space<vmem>>, vector<16x256xf32>
    %5 = arith.truncf %4 : vector<16x256xf32> to vector<16x256xbf16>
    %c0_4 = arith.constant 0 : index
    %c0_5 = arith.constant 0 : index
    %6 = vector.load %arg3[%c0_4, %c0_5] : memref<256x512xbf16, #tpu.memory_space<vmem>>, vector<256x512xbf16>
    %cst = arith.constant dense<0.000000e+00> : vector<16x512xf32>
    %7 = tpu.matmul %5, %6, %cst {dimension_numbers = #tpu.dot_dimension_numbers<[1], [0], [0], [1], [0, 0, 1, 1], [], []>} : vector<16x256xbf16>, vector<256x512xbf16>, vector<16x512xf32> -> vector<16x512xf32>
    %8 = arith.addf %3, %7 : vector<16x512xf32>
    %c0_6 = arith.constant 0 : index
    %c0_7 = arith.constant 0 : index
    %9 = vector.load %arg10[%c0_6, %c0_7] : memref<16x512xf32, #tpu.memory_space<vmem>>, vector<16x512xf32>
    tpu.vector_store %arg10[%c0_6, %c0_7], %8 {strides = array<i32>} : memref<16x512xf32, #tpu.memory_space<vmem>>, vector<16x512xf32>,
    %c0_i32_8 = arith.constant 0 : i32
    %10 = arith.cmpi eq, %arg1, %c0_i32_8 : i32
    %11 = arith.extui %10 : i1 to i32
    %c0_i32_9 = arith.constant 0 : i32
    %12 = arith.cmpi ne, %11, %c0_i32_9 : i32
    scf.if %12 {
      %c0_10 = arith.constant 0 : index
      %c0_11 = arith.constant 0 : index
      %13 = vector.load %arg10[%c0_10, %c0_11] : memref<16x512xf32, #tpu.memory_space<vmem>>, vector<16x512xf32>
      %c0_12 = arith.constant 0 : index
      %c0_13 = arith.constant 0 : index
      %14 = vector.load %arg4[%c0_12, %c0_13] : memref<1x512xf32, #tpu.memory_space<vmem>>, vector<1x512xf32>
      %15 = vector.broadcast %14 : vector<1x512xf32> to vector<16x512xf32>
      %16 = arith.addf %13, %15 : vector<16x512xf32>
      %cst_14 = arith.constant 2.000000e-01 : f32
      %17 = vector.broadcast %cst_14 : f32 to vector<16x512xf32>
      %18 = arith.mulf %17, %16 : vector<16x512xf32>
      %19 = arith.maximumf %16, %18 : vector<16x512xf32>
      %20 = arith.truncf %19 : vector<16x512xf32> to vector<16x512xbf16>
      %c0_15 = arith.constant 0 : index
      %c0_16 = arith.constant 0 : index
      %21 = vector.load %arg5[%c0_15, %c0_16] : memref<512x256xbf16, #tpu.memory_space<vmem>>, vector<512x256xbf16>
      %cst_17 = arith.constant dense<0.000000e+00> : vector<16x256xf32>
      %22 = tpu.matmul %20, %21, %cst_17 {dimension_numbers = #tpu.dot_dimension_numbers<[1], [0], [0], [1], [0, 0, 1, 1], [], []>} : vector<16x512xbf16>, vector<512x256xbf16>, vector<16x256xf32> -> vector<16x256xf32>
      %c0_18 = arith.constant 0 : index
      %c0_19 = arith.constant 0 : index
      %23 = vector.load %arg6[%c0_18, %c0_19] : memref<1x256xf32, #tpu.memory_space<vmem>>, vector<1x256xf32>
      %24 = vector.broadcast %23 : vector<1x256xf32> to vector<16x256xf32>
      %25 = arith.addf %22, %24 : vector<16x256xf32>
      %cst_20 = arith.constant 2.000000e-01 : f32
      %26 = vector.broadcast %cst_20 : f32 to vector<16x256xf32>
      %27 = arith.mulf %26, %25 : vector<16x256xf32>
      %28 = arith.maximumf %25, %27 : vector<16x256xf32>
      %c0_21 = arith.constant 0 : index
      %c0_22 = arith.constant 0 : index
      %29 = vector.load %arg7[%c0_21, %c0_22] : memref<1x256xf32, #tpu.memory_space<vmem>>, vector<1x256xf32>
      %30 = vector.broadcast %29 : vector<1x256xf32> to vector<16x256xf32>
      %31 = arith.mulf %28, %30 : vector<16x256xf32>
      %cst_23 = arith.constant dense<0.000000e+00> : vector<16xf32>
      %32 = vector.multi_reduction <add>, %31, %cst_23 [1] : vector<16x256xf32> to vector<16xf32>
      %33 = vector.shape_cast %32 : vector<16xf32> to vector<1x16xf32>
      %c0_24 = arith.constant 0 : index
      %c0_25 = arith.constant 0 : index
      %34 = vector.load %arg8[%c0_24, %c0_25] : memref<1x1xf32, #tpu.memory_space<vmem>>, vector<1x1xf32>
      %35 = vector.broadcast %34 : vector<1x1xf32> to vector<1x16xf32>
      %36 = arith.addf %33, %35 : vector<1x16xf32>
      %37 = vector.shape_cast %36 : vector<1x16xf32> to vector<1x16xf32>
      %38 = vector.broadcast %37 : vector<1x16xf32> to vector<8x16xf32>
      %c0_26 = arith.constant 0 : index
      %c0_27 = arith.constant 0 : index
      %39 = vector.load %arg9[%c0_26, %c0_27] : memref<8x16xf32, #tpu.memory_space<vmem>>, vector<8x16xf32>
      tpu.vector_store %arg9[%c0_26, %c0_27], %38 {strides = array<i32>} : memref<8x16xf32, #tpu.memory_space<vmem>>, vector<8x16xf32>,
    } else {
    }
    return
  }
  func.func @transform_0(%arg0: i32, %arg1: i32) -> (i32, i32) {
    %c0_i32 = arith.constant 0 : i32
    return %arg0, %arg1 : i32, i32
  }
  func.func @transform_1(%arg0: i32, %arg1: i32) -> (i32, i32) {
    %c0_i32 = arith.constant 0 : i32
    %c0_i32_0 = arith.constant 0 : i32
    return %arg1, %c0_i32 : i32, i32
  }
  func.func @transform_2(%arg0: i32, %arg1: i32) -> (i32, i32) {
    %c0_i32 = arith.constant 0 : i32
    %c0_i32_0 = arith.constant 0 : i32
    %c0_i32_1 = arith.constant 0 : i32
    return %c0_i32, %c0_i32_0 : i32, i32
  }
  func.func @transform_3(%arg0: i32, %arg1: i32) -> (i32, i32) {
    %c0_i32 = arith.constant 0 : i32
    %c0_i32_0 = arith.constant 0 : i32
    %c0_i32_1 = arith.constant 0 : i32
    return %c0_i32, %c0_i32_0 : i32, i32
  }
  func.func @transform_4(%arg0: i32, %arg1: i32) -> (i32, i32) {
    %c0_i32 = arith.constant 0 : i32
    %c0_i32_0 = arith.constant 0 : i32
    %c0_i32_1 = arith.constant 0 : i32
    return %c0_i32, %c0_i32_0 : i32, i32
  }
  func.func @transform_5(%arg0: i32, %arg1: i32) -> (i32, i32) {
    %c0_i32 = arith.constant 0 : i32
    %c0_i32_0 = arith.constant 0 : i32
    %c0_i32_1 = arith.constant 0 : i32
    return %c0_i32, %c0_i32_0 : i32, i32
  }
  func.func @transform_6(%arg0: i32, %arg1: i32) -> (i32, i32) {
    %c0_i32 = arith.constant 0 : i32
    %c0_i32_0 = arith.constant 0 : i32
    %c0_i32_1 = arith.constant 0 : i32
    return %c0_i32, %c0_i32_0 : i32, i32
  }
  func.func @transform_7(%arg0: i32, %arg1: i32) -> (i32, i32) {
    %c0_i32 = arith.constant 0 : i32
    %c0_i32_0 = arith.constant 0 : i32
    return %c0_i32, %arg0 : i32, i32
  }
}

</mosaic_0001>

<llo_original>
// kernel: discriminator_forward.1
$region0: #{discriminator_forward.1}
  #allocation0 [shape = 'u32[]', space=smem, size = 0x4, offset = 0x4, fixed_abs, tag = 'smem constant byte address 0x4 - core index']
  #allocation1 [shape = 'u32[144,128]{1,0:T(1,128)}', space=vmem, size = 0x12000, scoped, tag = 'internal scratch']
  #allocation2 [shape = 'f32[16,512]{1,0:T(8,128)}', space=vmem, size = 0x8000, scoped, tag = 'scratch operand']
  #allocation3 [shape = 'f32[1,1]{1,0:T(1,128)S(1)}', space=vmem, size = 0x200, scoped, tag = 'scoped memory for discriminator_forward.1']
  %s0 = inlined_call_operand.vmem [shape: f32[16,256], index: 0, kind: input, shape index: {}]
  %s1 = inlined_call_operand.vmem [shape: bf16[256,512], index: 1, kind: input, shape index: {}]
  %s2 = inlined_call_operand.vmem [shape: f32[1,512], index: 2, kind: input, shape index: {}]
  %s3 = inlined_call_operand.vmem [shape: bf16[512,256], index: 3, kind: input, shape index: {}]
  %s4 = inlined_call_operand.vmem [shape: f32[1,256], index: 4, kind: input, shape index: {}]
  %s5 = inlined_call_operand.vmem [shape: f32[1,256], index: 5, kind: input, shape index: {}]
  %s6 = inlined_call_operand.<no memory space> [shape: f32[1,1], index: 6, kind: input, shape index: {}]
  %s7 = inlined_call_operand.vmem [shape: f32[8,16], index: 7, kind: output, shape index: {}]
  %s8 = sld [smem:[#allocation0]]
  $region46: #{discriminator_forward.1} parent=0
    _
  %s10 = ssub.s32 1, %s8
  %s11 = scalar_select 0, %s10, %s8
  %v12 = vstv %s6
  %13 = vst [vmem:[#allocation3] sm:$0x1] %v12
  // Predicated region
  $region2: #{discriminator_forward.1} parent=0 // pred_check
    _
  $region3: #{discriminator_forward.1} parent=0 // pred_check_branch
    %15 = sbr.rel (0) target = $region5
  $region4: #{discriminator_forward.1} parent=0 // pred_region
    _
  $region5: #{discriminator_forward.1} parent=0 // pred_fallthru
    _
  // Predicated region
  $region6: #{discriminator_forward.1} parent=0 // pred_check
    _
  $region7: #{discriminator_forward.1} parent=0 // pred_check_branch
    %17 = sbr.rel (0) target = $region9
  $region8: #{discriminator_forward.1} parent=0 // pred_region
    _
  $region9: #{discriminator_forward.1} parent=0 // pred_fallthru
    _
  // Predicated region
  $region10: #{discriminator_forward.1} parent=0 // pred_check
    _
  $region11: #{discriminator_forward.1} parent=0 // pred_check_branch
    %19 = sbr.rel (0) target = $region13
  $region12: #{discriminator_forward.1} parent=0 // pred_region
    _
  $region13: #{discriminator_forward.1} parent=0 // pred_fallthru
    _
  // Predicated region
  $region14: #{discriminator_forward.1} parent=0 // pred_check
    _
  $region15: #{discriminator_forward.1} parent=0 // pred_check_branch
    %21 = sbr.rel (0) target = $region17
  $region16: #{discriminator_forward.1} parent=0 // pred_region
    _
  $region17: #{discriminator_forward.1} parent=0 // pred_fallthru
    _
  // Predicated region
  $region18: #{discriminator_forward.1} parent=0 // pred_check
    _
  $region19: #{discriminator_forward.1} parent=0 // pred_check_branch
    %23 = sbr.rel (0) target = $region21
  $region20: #{discriminator_forward.1} parent=0 // pred_region
    _
  $region21: #{discriminator_forward.1} parent=0 // pred_fallthru
    _
  // Predicated region
  $region22: #{discriminator_forward.1} parent=0 // pred_check
    _
  $region23: #{discriminator_forward.1} parent=0 // pred_check_branch
    %25 = sbr.rel (0) target = $region25
  $region24: #{discriminator_forward.1} parent=0 // pred_region
    _
  $region25: #{discriminator_forward.1} parent=0 // pred_fallthru
    _
  // Predicated region
  $region26: #{discriminator_forward.1} parent=0 // pred_check
    _
  $region27: #{discriminator_forward.1} parent=0 // pred_check_branch
    %27 = sbr.rel (0) target = $region29
  $region28: #{discriminator_forward.1} parent=0 // pred_region
    _
  $region29: #{discriminator_forward.1} parent=0 // pred_fallthru
    _
  %p28 = scmp.eq.s32.totalorder 0, 0
  // Predicated region
  $region30: #{discriminator_forward.1} parent=0 // pred_check
    %p29 = pneg %p28
  $region31: #{discriminator_forward.1} parent=0 // pred_check_branch
    %31 = sbr.rel (%p29) target = $region33
  $region32: #{discriminator_forward.1} parent=0 // pred_region
    %32 = vst [vmem:[#allocation2] sm:$0xff] 0.0
    %33 = vst [vmem:[#allocation2 + $0x8] sm:$0xff] 0.0
    %34 = vst [vmem:[#allocation2 + $0x10] sm:$0xff] 0.0
    %35 = vst [vmem:[#allocation2 + $0x18] sm:$0xff] 0.0
    %36 = vst [vmem:[#allocation2 + $0x20] sm:$0xff] 0.0
    %37 = vst [vmem:[#allocation2 + $0x28] sm:$0xff] 0.0
    %38 = vst [vmem:[#allocation2 + $0x30] sm:$0xff] 0.0
    %39 = vst [vmem:[#allocation2 + $0x38] sm:$0xff] 0.0
  $region33: #{discriminator_forward.1} parent=0 // pred_fallthru
    _
  %v40 = vld [vmem:[#allocation2] sm:$0xff]
  %v41 = vld [vmem:[#allocation2 + $0x8] sm:$0xff]
  %v42 = vld [vmem:[#allocation2 + $0x10] sm:$0xff]
  %v43 = vld [vmem:[#allocation2 + $0x18] sm:$0xff]
  %v44 = vld [vmem:[#allocation2 + $0x20] sm:$0xff]
  %v45 = vld [vmem:[#allocation2 + $0x28] sm:$0xff]
  %v46 = vld [vmem:[#allocation2 + $0x30] sm:$0xff]
  %v47 = vld [vmem:[#allocation2 + $0x38] sm:$0xff]
  %v48 = vld [vmem:[%s0] sm:$0xff]
  %v49 = vld [vmem:[%s0 + $0x8] sm:$0xff]
  %v50 = vld [vmem:[%s0 + $0x10] sm:$0xff]
  %v51 = vld [vmem:[%s0 + $0x18] sm:$0xff]
  %v52 = vpack.c.bf16 %v50, %v48
  %v53 = vpack.c.bf16 %v51, %v49
  %v54 = vld [vmem:[%s1] sm:$0xff]
  %v55 = vld [vmem:[%s1 + $0x8] sm:$0xff]
  %v56 = vld [vmem:[%s1 + $0x10] sm:$0xff]
  %v57 = vld [vmem:[%s1 + $0x18] sm:$0xff]
  %v58 = vld [vmem:[%s1 + $0x20] sm:$0xff]
  %v59 = vld [vmem:[%s1 + $0x28] sm:$0xff]
  %v60 = vld [vmem:[%s1 + $0x30] sm:$0xff]
  %v61 = vld [vmem:[%s1 + $0x38] sm:$0xff]
  %v62 = vld [vmem:[%s1 + $0x40] sm:$0xff]
  %v63 = vld [vmem:[%s1 + $0x48] sm:$0xff]
  %v64 = vld [vmem:[%s1 + $0x50] sm:$0xff]
  %v65 = vld [vmem:[%s1 + $0x58] sm:$0xff]
  %v66 = vld [vmem:[%s1 + $0x60] sm:$0xff]
  %v67 = vld [vmem:[%s1 + $0x68] sm:$0xff]
  %v68 = vld [vmem:[%s1 + $0x70] sm:$0xff]
  %v69 = vld [vmem:[%s1 + $0x78] sm:$0xff]
  %v70 = vld [vmem:[%s1 + $0x80] sm:$0xff]
  %v71 = vld [vmem:[%s1 + $0x88] sm:$0xff]
  %v72 = vld [vmem:[%s1 + $0x90] sm:$0xff]
  %v73 = vld [vmem:[%s1 + $0x98] sm:$0xff]
  %v74 = vld [vmem:[%s1 + $0xa0] sm:$0xff]
  %v75 = vld [vmem:[%s1 + $0xa8] sm:$0xff]
  %v76 = vld [vmem:[%s1 + $0xb0] sm:$0xff]
  %v77 = vld [vmem:[%s1 + $0xb8] sm:$0xff]
  %v78 = vld [vmem:[%s1 + $0xc0] sm:$0xff]
  %v79 = vld [vmem:[%s1 + $0xc8] sm:$0xff]
  %v80 = vld [vmem:[%s1 + $0xd0] sm:$0xff]
  %v81 = vld [vmem:[%s1 + $0xd8] sm:$0xff]
  %v82 = vld [vmem:[%s1 + $0xe0] sm:$0xff]
  %v83 = vld [vmem:[%s1 + $0xe8] sm:$0xff]
  %v84 = vld [vmem:[%s1 + $0xf0] sm:$0xff]
  %v85 = vld [vmem:[%s1 + $0xf8] sm:$0xff]
  %v86 = vld [vmem:[%s1 + $0x100] sm:$0xff]
  %v87 = vld [vmem:[%s1 + $0x108] sm:$0xff]
  %v88 = vld [vmem:[%s1 + $0x110] sm:$0xff]
  %v89 = vld [vmem:[%s1 + $0x118] sm:$0xff]
  %v90 = vld [vmem:[%s1 + $0x120] sm:$0xff]
  %v91 = vld [vmem:[%s1 + $0x128] sm:$0xff]
  %v92 = vld [vmem:[%s1 + $0x130] sm:$0xff]
  %v93 = vld [vmem:[%s1 + $0x138] sm:$0xff]
  %v94 = vld [vmem:[%s1 + $0x140] sm:$0xff]
  %v95 = vld [vmem:[%s1 + $0x148] sm:$0xff]
  %v96 = vld [vmem:[%s1 + $0x150] sm:$0xff]
  %v97 = vld [vmem:[%s1 + $0x158] sm:$0xff]
  %v98 = vld [vmem:[%s1 + $0x160] sm:$0xff]
  %v99 = vld [vmem:[%s1 + $0x168] sm:$0xff]
  %v100 = vld [vmem:[%s1 + $0x170] sm:$0xff]
  %v101 = vld [vmem:[%s1 + $0x178] sm:$0xff]
  %v102 = vld [vmem:[%s1 + $0x180] sm:$0xff]
  %v103 = vld [vmem:[%s1 + $0x188] sm:$0xff]
  %v104 = vld [vmem:[%s1 + $0x190] sm:$0xff]
  %v105 = vld [vmem:[%s1 + $0x198] sm:$0xff]
  %v106 = vld [vmem:[%s1 + $0x1a0] sm:$0xff]
  %v107 = vld [vmem:[%s1 + $0x1a8] sm:$0xff]
  %v108 = vld [vmem:[%s1 + $0x1b0] sm:$0xff]
  %v109 = vld [vmem:[%s1 + $0x1b8] sm:$0xff]
  %v110 = vld [vmem:[%s1 + $0x1c0] sm:$0xff]
  %v111 = vld [vmem:[%s1 + $0x1c8] sm:$0xff]
  %v112 = vld [vmem:[%s1 + $0x1d0] sm:$0xff]
  %v113 = vld [vmem:[%s1 + $0x1d8] sm:$0xff]
  %v114 = vld [vmem:[%s1 + $0x1e0] sm:$0xff]
  %v115 = vld [vmem:[%s1 + $0x1e8] sm:$0xff]
  %v116 = vld [vmem:[%s1 + $0x1f0] sm:$0xff]
  %v117 = vld [vmem:[%s1 + $0x1f8] sm:$0xff]
  %v182 = vunpack.c.l.b16 %v54
  %v183 = vunpack.c.h.b16 %v54
  %v184 = vunpack.c.l.b16 %v55
  %v185 = vunpack.c.h.b16 %v55
  %v186 = vunpack.c.l.b16 %v56
  %v187 = vunpack.c.h.b16 %v56
  %v188 = vunpack.c.l.b16 %v57
  %v189 = vunpack.c.h.b16 %v57
  %v190 = vunpack.c.l.b16 %v58
  %v191 = vunpack.c.h.b16 %v58
  %v192 = vunpack.c.l.b16 %v59
  %v193 = vunpack.c.h.b16 %v59
  %v194 = vunpack.c.l.b16 %v60
  %v195 = vunpack.c.h.b16 %v60
  %v196 = vunpack.c.l.b16 %v61
  %v197 = vunpack.c.h.b16 %v61
  %v198 = vunpack.c.l.b16 %v62
  %v199 = vunpack.c.h.b16 %v62
  %v200 = vunpack.c.l.b16 %v63
  %v201 = vunpack.c.h.b16 %v63
  %v202 = vunpack.c.l.b16 %v64
  %v203 = vunpack.c.h.b16 %v64
  %v204 = vunpack.c.l.b16 %v65
  %v205 = vunpack.c.h.b16 %v65
  %v206 = vunpack.c.l.b16 %v66
  %v207 = vunpack.c.h.b16 %v66
  %v208 = vunpack.c.l.b16 %v67
  %v209 = vunpack.c.h.b16 %v67
  %v210 = vunpack.c.l.b16 %v68
  %v211 = vunpack.c.h.b16 %v68
  %v212 = vunpack.c.l.b16 %v69
  %v213 = vunpack.c.h.b16 %v69
  %v214 = vunpack.c.l.b16 %v70
  %v215 = vunpack.c.h.b16 %v70
  %v216 = vunpack.c.l.b16 %v71
  %v217 = vunpack.c.h.b16 %v71
  %v218 = vunpack.c.l.b16 %v72
  %v219 = vunpack.c.h.b16 %v72
  %v220 = vunpack.c.l.b16 %v73
  %v221 = vunpack.c.h.b16 %v73
  %v222 = vunpack.c.l.b16 %v74
  %v223 = vunpack.c.h.b16 %v74
  %v224 = vunpack.c.l.b16 %v75
  %v225 = vunpack.c.h.b16 %v75
  %v226 = vunpack.c.l.b16 %v76
  %v227 = vunpack.c.h.b16 %v76
  %v228 = vunpack.c.l.b16 %v77
  %v229 = vunpack.c.h.b16 %v77
  %v230 = vunpack.c.l.b16 %v78
  %v231 = vunpack.c.h.b16 %v78
  %v232 = vunpack.c.l.b16 %v79
  %v233 = vunpack.c.h.b16 %v79
  %v234 = vunpack.c.l.b16 %v80
  %v235 = vunpack.c.h.b16 %v80
  %v236 = vunpack.c.l.b16 %v81
  %v237 = vunpack.c.h.b16 %v81
  %v238 = vunpack.c.l.b16 %v82
  %v239 = vunpack.c.h.b16 %v82
  %v240 = vunpack.c.l.b16 %v83
  %v241 = vunpack.c.h.b16 %v83
  %v242 = vunpack.c.l.b16 %v84
  %v243 = vunpack.c.h.b16 %v84
  %v244 = vunpack.c.l.b16 %v85
  %v245 = vunpack.c.h.b16 %v85
  %v246 = vunpack.c.l.b16 %v86
  %v247 = vunpack.c.h.b16 %v86
  %v248 = vunpack.c.l.b16 %v87
  %v249 = vunpack.c.h.b16 %v87
  %v250 = vunpack.c.l.b16 %v88
  %v251 = vunpack.c.h.b16 %v88
  %v252 = vunpack.c.l.b16 %v89
  %v253 = vunpack.c.h.b16 %v89
  %v254 = vunpack.c.l.b16 %v90
  %v255 = vunpack.c.h.b16 %v90
  %v256 = vunpack.c.l.b16 %v91
  %v257 = vunpack.c.h.b16 %v91
  %v258 = vunpack.c.l.b16 %v92
  %v259 = vunpack.c.h.b16 %v92
  %v260 = vunpack.c.l.b16 %v93
  %v261 = vunpack.c.h.b16 %v93
  %v262 = vunpack.c.l.b16 %v94
  %v263 = vunpack.c.h.b16 %v94
  %v264 = vunpack.c.l.b16 %v95
  %v265 = vunpack.c.h.b16 %v95
  %v266 = vunpack.c.l.b16 %v96
  %v267 = vunpack.c.h.b16 %v96
  %v268 = vunpack.c.l.b16 %v97
  %v269 = vunpack.c.h.b16 %v97
  %v270 = vunpack.c.l.b16 %v98
  %v271 = vunpack.c.h.b16 %v98
  %v272 = vunpack.c.l.b16 %v99
  %v273 = vunpack.c.h.b16 %v99
  %v274 = vunpack.c.l.b16 %v100
  %v275 = vunpack.c.h.b16 %v100
  %v276 = vunpack.c.l.b16 %v101
  %v277 = vunpack.c.h.b16 %v101
  %v278 = vunpack.c.l.b16 %v102
  %v279 = vunpack.c.h.b16 %v102
  %v280 = vunpack.c.l.b16 %v103
  %v281 = vunpack.c.h.b16 %v103
  %v282 = vunpack.c.l.b16 %v104
  %v283 = vunpack.c.h.b16 %v104
  %v284 = vunpack.c.l.b16 %v105
  %v285 = vunpack.c.h.b16 %v105
  %v286 = vunpack.c.l.b16 %v106
  %v287 = vunpack.c.h.b16 %v106
  %v288 = vunpack.c.l.b16 %v107
  %v289 = vunpack.c.h.b16 %v107
  %v290 = vunpack.c.l.b16 %v108
  %v291 = vunpack.c.h.b16 %v108
  %v292 = vunpack.c.l.b16 %v109
  %v293 = vunpack.c.h.b16 %v109
  %v294 = vunpack.c.l.b16 %v110
  %v295 = vunpack.c.h.b16 %v110
  %v296 = vunpack.c.l.b16 %v111
  %v297 = vunpack.c.h.b16 %v111
  %v298 = vunpack.c.l.b16 %v112
  %v299 = vunpack.c.h.b16 %v112
  %v300 = vunpack.c.l.b16 %v113
  %v301 = vunpack.c.h.b16 %v113
  %v302 = vunpack.c.l.b16 %v114
  %v303 = vunpack.c.h.b16 %v114
  %v304 = vunpack.c.l.b16 %v115
  %v305 = vunpack.c.h.b16 %v115
  %v306 = vunpack.c.l.b16 %v116
  %v307 = vunpack.c.h.b16 %v116
  %v308 = vunpack.c.l.b16 %v117
  %v309 = vunpack.c.h.b16 %v117
  %v310 = vpack.c.b16 %v186, %v182
  %v311 = vpack.c.b16 %v187, %v183
  %v312 = vpack.c.b16 %v188, %v184
  %v313 = vpack.c.b16 %v189, %v185
  %v314 = vpack.c.b16 %v194, %v190
  %v315 = vpack.c.b16 %v195, %v191
  %v316 = vpack.c.b16 %v196, %v192
  %v317 = vpack.c.b16 %v197, %v193
  %v318 = vpack.c.b16 %v202, %v198
  %v319 = vpack.c.b16 %v203, %v199
  %v320 = vpack.c.b16 %v204, %v200
  %v321 = vpack.c.b16 %v205, %v201
  %v322 = vpack.c.b16 %v210, %v206
  %v323 = vpack.c.b16 %v211, %v207
  %v324 = vpack.c.b16 %v212, %v208
  %v325 = vpack.c.b16 %v213, %v209
  %v326 = vpack.c.b16 %v218, %v214
  %v327 = vpack.c.b16 %v219, %v215
  %v328 = vpack.c.b16 %v220, %v216
  %v329 = vpack.c.b16 %v221, %v217
  %v330 = vpack.c.b16 %v226, %v222
  %v331 = vpack.c.b16 %v227, %v223
  %v332 = vpack.c.b16 %v228, %v224
  %v333 = vpack.c.b16 %v229, %v225
  %v334 = vpack.c.b16 %v234, %v230
  %v335 = vpack.c.b16 %v235, %v231
  %v336 = vpack.c.b16 %v236, %v232
  %v337 = vpack.c.b16 %v237, %v233
  %v338 = vpack.c.b16 %v242, %v238
  %v339 = vpack.c.b16 %v243, %v239
  %v340 = vpack.c.b16 %v244, %v240
  %v341 = vpack.c.b16 %v245, %v241
  %v342 = vpack.c.b16 %v250, %v246
  %v343 = vpack.c.b16 %v251, %v247
  %v344 = vpack.c.b16 %v252, %v248
  %v345 = vpack.c.b16 %v253, %v249
  %v346 = vpack.c.b16 %v258, %v254
  %v347 = vpack.c.b16 %v259, %v255
  %v348 = vpack.c.b16 %v260, %v256
  %v349 = vpack.c.b16 %v261, %v257
  %v350 = vpack.c.b16 %v266, %v262
  %v351 = vpack.c.b16 %v267, %v263
  %v352 = vpack.c.b16 %v268, %v264
  %v353 = vpack.c.b16 %v269, %v265
  %v354 = vpack.c.b16 %v274, %v270
  %v355 = vpack.c.b16 %v275, %v271
  %v356 = vpack.c.b16 %v276, %v272
  %v357 = vpack.c.b16 %v277, %v273
  %v358 = vpack.c.b16 %v282, %v278
  %v359 = vpack.c.b16 %v283, %v279
  %v360 = vpack.c.b16 %v284, %v280
  %v361 = vpack.c.b16 %v285, %v281
  %v362 = vpack.c.b16 %v290, %v286
  %v363 = vpack.c.b16 %v291, %v287
  %v364 = vpack.c.b16 %v292, %v288
  %v365 = vpack.c.b16 %v293, %v289
  %v366 = vpack.c.b16 %v298, %v294
  %v367 = vpack.c.b16 %v299, %v295
  %v368 = vpack.c.b16 %v300, %v296
  %v369 = vpack.c.b16 %v301, %v297
  %v370 = vpack.c.b16 %v306, %v302
  %v371 = vpack.c.b16 %v307, %v303
  %v372 = vpack.c.b16 %v308, %v304
  %v373 = vpack.c.b16 %v309, %v305
  %438 = vmatprep.subr.bf16.mxu0 %v311
  %439 = vmatpush1.bf16.msra.mxu0 %v310
  %440 = vmatprep.subr.bf16.mxu0 %v315
  %441 = vmatpush1.bf16.msra.mxu0 %v314
  %442 = vmatprep.subr.bf16.mxu0 %v319
  %443 = vmatpush1.bf16.msra.mxu0 %v318
  %444 = vmatprep.subr.bf16.mxu0 %v323
  %445 = vmatpush1.bf16.msra.mxu0 %v322
  %446 = vmatprep.subr.bf16.mxu0 %v327
  %447 = vmatpush1.bf16.msra.mxu0 %v326
  %448 = vmatprep.subr.bf16.mxu0 %v331
  %449 = vmatpush1.bf16.msra.mxu0 %v330
  %450 = vmatprep.subr.bf16.mxu0 %v335
  %451 = vmatpush1.bf16.msra.mxu0 %v334
  %452 = vmatprep.subr.bf16.mxu0 %v339
  %453 = vmatpush1.bf16.msra.mxu0 %v338
  %454 = vmatprep.subr.bf16.mxu0 %v343
  %455 = vmatpush1.bf16.msra.mxu0 %v342
  %456 = vmatprep.subr.bf16.mxu0 %v347
  %457 = vmatpush1.bf16.msra.mxu0 %v346
  %458 = vmatprep.subr.bf16.mxu0 %v351
  %459 = vmatpush1.bf16.msra.mxu0 %v350
  %460 = vmatprep.subr.bf16.mxu0 %v355
  %461 = vmatpush1.bf16.msra.mxu0 %v354
  %462 = vmatprep.subr.bf16.mxu0 %v359
  %463 = vmatpush1.bf16.msra.mxu0 %v358
  %464 = vmatprep.subr.bf16.mxu0 %v363
  %465 = vmatpush1.bf16.msra.mxu0 %v362
  %466 = vmatprep.subr.bf16.mxu0 %v367
  %467 = vmatpush1.bf16.msra.mxu0 %v366
  %468 = vmatprep.subr.bf16.mxu0 %v371
  %469 = vmatpush1.bf16.msra.mxu0 %v370
  %470 = vmatprep.mubr.bf16.mxu0 %v53
  %471 = vmatmul.mubr.bf16.gmra.mrb[0].mxu0 %v52
  %v472 = vpop.f32.mrb[0].mxu0
  %v473 = vadd.f32 0.0, %v472
  %v474 = vpop.f32.mrb[0].mxu0
  %v475 = vadd.f32 0.0, %v474
  %v476 = vpop.f32.mrb[0].mxu0
  %v477 = vadd.f32 0.0, %v476
  %v478 = vpop.f32.mrb[0].mxu0
  %v479 = vadd.f32 0.0, %v478
  %480 = vdwg.mxu0
  %481 = vmatprep.subr.bf16.mxu0 %v313
  %482 = vmatpush1.bf16.msra.mxu0 %v312
  %483 = vmatprep.subr.bf16.mxu0 %v317
  %484 = vmatpush1.bf16.msra.mxu0 %v316
  %485 = vmatprep.subr.bf16.mxu0 %v321
  %486 = vmatpush1.bf16.msra.mxu0 %v320
  %487 = vmatprep.subr.bf16.mxu0 %v325
  %488 = vmatpush1.bf16.msra.mxu0 %v324
  %489 = vmatprep.subr.bf16.mxu0 %v329
  %490 = vmatpush1.bf16.msra.mxu0 %v328
  %491 = vmatprep.subr.bf16.mxu0 %v333
  %492 = vmatpush1.bf16.msra.mxu0 %v332
  %493 = vmatprep.subr.bf16.mxu0 %v337
  %494 = vmatpush1.bf16.msra.mxu0 %v336
  %495 = vmatprep.subr.bf16.mxu0 %v341
  %496 = vmatpush1.bf16.msra.mxu0 %v340
  %497 = vmatprep.subr.bf16.mxu0 %v345
  %498 = vmatpush1.bf16.msra.mxu0 %v344
  %499 = vmatprep.subr.bf16.mxu0 %v349
  %500 = vmatpush1.bf16.msra.mxu0 %v348
  %501 = vmatprep.subr.bf16.mxu0 %v353
  %502 = vmatpush1.bf16.msra.mxu0 %v352
  %503 = vmatprep.subr.bf16.mxu0 %v357
  %504 = vmatpush1.bf16.msra.mxu0 %v356
  %505 = vmatprep.subr.bf16.mxu0 %v361
  %506 = vmatpush1.bf16.msra.mxu0 %v360
  %507 = vmatprep.subr.bf16.mxu0 %v365
  %508 = vmatpush1.bf16.msra.mxu0 %v364
  %509 = vmatprep.subr.bf16.mxu0 %v369
  %510 = vmatpush1.bf16.msra.mxu0 %v368
  %511 = vmatprep.subr.bf16.mxu0 %v373
  %512 = vmatpush1.bf16.msra.mxu0 %v372
  %513 = vmatprep.mubr.bf16.mxu0 %v53
  %514 = vmatmul.mubr.bf16.gmra.mrb[0].mxu0 %v52
  %v515 = vpop.f32.mrb[0].mxu0
  %v516 = vadd.f32 0.0, %v515
  %v517 = vpop.f32.mrb[0].mxu0
  %v518 = vadd.f32 0.0, %v517
  %v519 = vpop.f32.mrb[0].mxu0
  %v520 = vadd.f32 0.0, %v519
  %v521 = vpop.f32.mrb[0].mxu0
  %v522 = vadd.f32 0.0, %v521
  %523 = vdwg.mxu0
  %v524 = vadd.f32 %v40, %v473
  %v525 = vadd.f32 %v41, %v475
  %v526 = vadd.f32 %v42, %v516
  %v527 = vadd.f32 %v43, %v518
  %v528 = vadd.f32 %v44, %v477
  %v529 = vadd.f32 %v45, %v479
  %v530 = vadd.f32 %v46, %v520
  %v531 = vadd.f32 %v47, %v522
  %532 = vst [vmem:[#allocation2] sm:$0xff] %v524
  %533 = vst [vmem:[#allocation2 + $0x8] sm:$0xff] %v525
  %534 = vst [vmem:[#allocation2 + $0x10] sm:$0xff] %v526
  %535 = vst [vmem:[#allocation2 + $0x18] sm:$0xff] %v527
  %536 = vst [vmem:[#allocation2 + $0x20] sm:$0xff] %v528
  %537 = vst [vmem:[#allocation2 + $0x28] sm:$0xff] %v529
  %538 = vst [vmem:[#allocation2 + $0x30] sm:$0xff] %v530
  %539 = vst [vmem:[#allocation2 + $0x38] sm:$0xff] %v531
  // Predicated region
  $region34: #{discriminator_forward.1} parent=0 // pred_check
    %p540 = pneg %p28
  $region35: #{discriminator_forward.1} parent=0 // pred_check_branch
    %542 = sbr.rel (%p540) target = $region37
  $region36: #{discriminator_forward.1} parent=0 // pred_region
    %v543 = vld [vmem:[#allocation2] sm:$0xff]
    %v544 = vld [vmem:[#allocation2 + $0x8] sm:$0xff]
    %v545 = vld [vmem:[#allocation2 + $0x10] sm:$0xff]
    %v546 = vld [vmem:[#allocation2 + $0x18] sm:$0xff]
    %v547 = vld [vmem:[#allocation2 + $0x20] sm:$0xff]
    %v548 = vld [vmem:[#allocation2 + $0x28] sm:$0xff]
    %v549 = vld [vmem:[#allocation2 + $0x30] sm:$0xff]
    %v550 = vld [vmem:[#allocation2 + $0x38] sm:$0xff]
    %v551 = vld [vmem:[%s2] sm:$0xf]
    %v553 = vlaneseq
    %v554 = vshrl.u32 %v553, 7
    %v555 = vsub.s32 0, %v554
    %v556 = vrot.slane %v551, %v555
    %v557 = vlaneseq
    %v558 = vshrl.u32 %v557, 7
    %v559 = vsub.s32 1, %v558
    %v560 = vrot.slane %v551, %v559
    %v561 = vlaneseq
    %v562 = vshrl.u32 %v561, 7
    %v563 = vsub.s32 2, %v562
    %v564 = vrot.slane %v551, %v563
    %v565 = vlaneseq
    %v566 = vshrl.u32 %v565, 7
    %v567 = vsub.s32 3, %v566
    %v568 = vrot.slane %v551, %v567
    %v573 = vadd.f32 %v543, %v556
    %v574 = vadd.f32 %v544, %v560
    %v575 = vadd.f32 %v545, %v564
    %v576 = vadd.f32 %v546, %v568
    %v577 = vadd.f32 %v547, %v556
    %v578 = vadd.f32 %v548, %v560
    %v579 = vadd.f32 %v549, %v564
    %v580 = vadd.f32 %v550, %v568
    %v581 = vmul.f32 %v573, 0.2
    %v582 = vmul.f32 %v574, 0.2
    %v583 = vmul.f32 %v575, 0.2
    %v584 = vmul.f32 %v576, 0.2
    %v585 = vmul.f32 %v577, 0.2
    %v586 = vmul.f32 %v578, 0.2
    %v587 = vmul.f32 %v579, 0.2
    %v588 = vmul.f32 %v580, 0.2
    %v589 = vmax.f32 %v573, %v581
    %v590 = vmax.f32 %v574, %v582
    %v591 = vmax.f32 %v575, %v583
    %v592 = vmax.f32 %v576, %v584
    %v593 = vmax.f32 %v577, %v585
    %v594 = vmax.f32 %v578, %v586
    %v595 = vmax.f32 %v579, %v587
    %v596 = vmax.f32 %v580, %v588
    %v597 = vpack.c.bf16 %v593, %v589
    %v598 = vpack.c.bf16 %v594, %v590
    %v599 = vpack.c.bf16 %v595, %v591
    %v600 = vpack.c.bf16 %v596, %v592
    %v601 = vld [vmem:[%s3] sm:$0xff]
    %v602 = vld [vmem:[%s3 + $0x8] sm:$0xff]
    %v603 = vld [vmem:[%s3 + $0x10] sm:$0xff]
    %v604 = vld [vmem:[%s3 + $0x18] sm:$0xff]
    %v605 = vld [vmem:[%s3 + $0x20] sm:$0xff]
    %v606 = vld [vmem:[%s3 + $0x28] sm:$0xff]
    %v607 = vld [vmem:[%s3 + $0x30] sm:$0xff]
    %v608 = vld [vmem:[%s3 + $0x38] sm:$0xff]
    %v609 = vld [vmem:[%s3 + $0x40] sm:$0xff]
    %v610 = vld [vmem:[%s3 + $0x48] sm:$0xff]
    %v611 = vld [vmem:[%s3 + $0x50] sm:$0xff]
    %v612 = vld [vmem:[%s3 + $0x58] sm:$0xff]
    %v613 = vld [vmem:[%s3 + $0x60] sm:$0xff]
    %v614 = vld [vmem:[%s3 + $0x68] sm:$0xff]
    %v615 = vld [vmem:[%s3 + $0x70] sm:$0xff]
    %v616 = vld [vmem:[%s3 + $0x78] sm:$0xff]
    %v617 = vld [vmem:[%s3 + $0x80] sm:$0xff]
    %v618 = vld [vmem:[%s3 + $0x88] sm:$0xff]
    %v619 = vld [vmem:[%s3 + $0x90] sm:$0xff]
    %v620 = vld [vmem:[%s3 + $0x98] sm:$0xff]
    %v621 = vld [vmem:[%s3 + $0xa0] sm:$0xff]
    %v622 = vld [vmem:[%s3 + $0xa8] sm:$0xff]
    %v623 = vld [vmem:[%s3 + $0xb0] sm:$0xff]
    %v624 = vld [vmem:[%s3 + $0xb8] sm:$0xff]
    %v625 = vld [vmem:[%s3 + $0xc0] sm:$0xff]
    %v626 = vld [vmem:[%s3 + $0xc8] sm:$0xff]
    %v627 = vld [vmem:[%s3 + $0xd0] sm:$0xff]
    %v628 = vld [vmem:[%s3 + $0xd8] sm:$0xff]
    %v629 = vld [vmem:[%s3 + $0xe0] sm:$0xff]
    %v630 = vld [vmem:[%s3 + $0xe8] sm:$0xff]
    %v631 = vld [vmem:[%s3 + $0xf0] sm:$0xff]
    %v632 = vld [vmem:[%s3 + $0xf8] sm:$0xff]
    %v633 = vld [vmem:[%s3 + $0x100] sm:$0xff]
    %v634 = vld [vmem:[%s3 + $0x108] sm:$0xff]
    %v635 = vld [vmem:[%s3 + $0x110] sm:$0xff]
    %v636 = vld [vmem:[%s3 + $0x118] sm:$0xff]
    %v637 = vld [vmem:[%s3 + $0x120] sm:$0xff]
    %v638 = vld [vmem:[%s3 + $0x128] sm:$0xff]
    %v639 = vld [vmem:[%s3 + $0x130] sm:$0xff]
    %v640 = vld [vmem:[%s3 + $0x138] sm:$0xff]
    %v641 = vld [vmem:[%s3 + $0x140] sm:$0xff]
    %v642 = vld [vmem:[%s3 + $0x148] sm:$0xff]
    %v643 = vld [vmem:[%s3 + $0x150] sm:$0xff]
    %v644 = vld [vmem:[%s3 + $0x158] sm:$0xff]
    %v645 = vld [vmem:[%s3 + $0x160] sm:$0xff]
    %v646 = vld [vmem:[%s3 + $0x168] sm:$0xff]
    %v647 = vld [vmem:[%s3 + $0x170] sm:$0xff]
    %v648 = vld [vmem:[%s3 + $0x178] sm:$0xff]
    %v649 = vld [vmem:[%s3 + $0x180] sm:$0xff]
    %v650 = vld [vmem:[%s3 + $0x188] sm:$0xff]
    %v651 = vld [vmem:[%s3 + $0x190] sm:$0xff]
    %v652 = vld [vmem:[%s3 + $0x198] sm:$0xff]
    %v653 = vld [vmem:[%s3 + $0x1a0] sm:$0xff]
    %v654 = vld [vmem:[%s3 + $0x1a8] sm:$0xff]
    %v655 = vld [vmem:[%s3 + $0x1b0] sm:$0xff]
    %v656 = vld [vmem:[%s3 + $0x1b8] sm:$0xff]
    %v657 = vld [vmem:[%s3 + $0x1c0] sm:$0xff]
    %v658 = vld [vmem:[%s3 + $0x1c8] sm:$0xff]
    %v659 = vld [vmem:[%s3 + $0x1d0] sm:$0xff]
    %v660 = vld [vmem:[%s3 + $0x1d8] sm:$0xff]
    %v661 = vld [vmem:[%s3 + $0x1e0] sm:$0xff]
    %v662 = vld [vmem:[%s3 + $0x1e8] sm:$0xff]
    %v663 = vld [vmem:[%s3 + $0x1f0] sm:$0xff]
    %v664 = vld [vmem:[%s3 + $0x1f8] sm:$0xff]
    %v665 = vld [vmem:[%s4] sm:$0x3]
    %v667 = vlaneseq
    %v668 = vshrl.u32 %v667, 7
    %v669 = vsub.s32 0, %v668
    %v670 = vrot.slane %v665, %v669
    %v671 = vlaneseq
    %v672 = vshrl.u32 %v671, 7
    %v673 = vsub.s32 1, %v672
    %v674 = vrot.slane %v665, %v673
    %v741 = vunpack.c.l.b16 %v601
    %v742 = vunpack.c.h.b16 %v601
    %v743 = vunpack.c.l.b16 %v602
    %v744 = vunpack.c.h.b16 %v602
    %v745 = vunpack.c.l.b16 %v603
    %v746 = vunpack.c.h.b16 %v603
    %v747 = vunpack.c.l.b16 %v604
    %v748 = vunpack.c.h.b16 %v604
    %v749 = vunpack.c.l.b16 %v605
    %v750 = vunpack.c.h.b16 %v605
    %v751 = vunpack.c.l.b16 %v606
    %v752 = vunpack.c.h.b16 %v606
    %v753 = vunpack.c.l.b16 %v607
    %v754 = vunpack.c.h.b16 %v607
    %v755 = vunpack.c.l.b16 %v608
    %v756 = vunpack.c.h.b16 %v608
    %v757 = vunpack.c.l.b16 %v609
    %v758 = vunpack.c.h.b16 %v609
    %v759 = vunpack.c.l.b16 %v610
    %v760 = vunpack.c.h.b16 %v610
    %v761 = vunpack.c.l.b16 %v611
    %v762 = vunpack.c.h.b16 %v611
    %v763 = vunpack.c.l.b16 %v612
    %v764 = vunpack.c.h.b16 %v612
    %v765 = vunpack.c.l.b16 %v613
    %v766 = vunpack.c.h.b16 %v613
    %v767 = vunpack.c.l.b16 %v614
    %v768 = vunpack.c.h.b16 %v614
    %v769 = vunpack.c.l.b16 %v615
    %v770 = vunpack.c.h.b16 %v615
    %v771 = vunpack.c.l.b16 %v616
    %v772 = vunpack.c.h.b16 %v616
    %v773 = vunpack.c.l.b16 %v617
    %v774 = vunpack.c.h.b16 %v617
    %v775 = vunpack.c.l.b16 %v618
    %v776 = vunpack.c.h.b16 %v618
    %v777 = vunpack.c.l.b16 %v619
    %v778 = vunpack.c.h.b16 %v619
    %v779 = vunpack.c.l.b16 %v620
    %v780 = vunpack.c.h.b16 %v620
    %v781 = vunpack.c.l.b16 %v621
    %v782 = vunpack.c.h.b16 %v621
    %v783 = vunpack.c.l.b16 %v622
    %v784 = vunpack.c.h.b16 %v622
    %v785 = vunpack.c.l.b16 %v623
    %v786 = vunpack.c.h.b16 %v623
    %v787 = vunpack.c.l.b16 %v624
    %v788 = vunpack.c.h.b16 %v624
    %v789 = vunpack.c.l.b16 %v625
    %v790 = vunpack.c.h.b16 %v625
    %v791 = vunpack.c.l.b16 %v626
    %v792 = vunpack.c.h.b16 %v626
    %v793 = vunpack.c.l.b16 %v627
    %v794 = vunpack.c.h.b16 %v627
    %v795 = vunpack.c.l.b16 %v628
    %v796 = vunpack.c.h.b16 %v628
    %v797 = vunpack.c.l.b16 %v629
    %v798 = vunpack.c.h.b16 %v629
    %v799 = vunpack.c.l.b16 %v630
    %v800 = vunpack.c.h.b16 %v630
    %v801 = vunpack.c.l.b16 %v631
    %v802 = vunpack.c.h.b16 %v631
    %v803 = vunpack.c.l.b16 %v632
    %v804 = vunpack.c.h.b16 %v632
    %v805 = vunpack.c.l.b16 %v633
    %v806 = vunpack.c.h.b16 %v633
    %v807 = vunpack.c.l.b16 %v634
    %v808 = vunpack.c.h.b16 %v634
    %v809 = vunpack.c.l.b16 %v635
    %v810 = vunpack.c.h.b16 %v635
    %v811 = vunpack.c.l.b16 %v636
    %v812 = vunpack.c.h.b16 %v636
    %v813 = vunpack.c.l.b16 %v637
    %v814 = vunpack.c.h.b16 %v637
    %v815 = vunpack.c.l.b16 %v638
    %v816 = vunpack.c.h.b16 %v638
    %v817 = vunpack.c.l.b16 %v639
    %v818 = vunpack.c.h.b16 %v639
    %v819 = vunpack.c.l.b16 %v640
    %v820 = vunpack.c.h.b16 %v640
    %v821 = vunpack.c.l.b16 %v641
    %v822 = vunpack.c.h.b16 %v641
    %v823 = vunpack.c.l.b16 %v642
    %v824 = vunpack.c.h.b16 %v642
    %v825 = vunpack.c.l.b16 %v643
    %v826 = vunpack.c.h.b16 %v643
    %v827 = vunpack.c.l.b16 %v644
    %v828 = vunpack.c.h.b16 %v644
    %v829 = vunpack.c.l.b16 %v645
    %v830 = vunpack.c.h.b16 %v645
    %v831 = vunpack.c.l.b16 %v646
    %v832 = vunpack.c.h.b16 %v646
    %v833 = vunpack.c.l.b16 %v647
    %v834 = vunpack.c.h.b16 %v647
    %v835 = vunpack.c.l.b16 %v648
    %v836 = vunpack.c.h.b16 %v648
    %v837 = vunpack.c.l.b16 %v649
    %v838 = vunpack.c.h.b16 %v649
    %v839 = vunpack.c.l.b16 %v650
    %v840 = vunpack.c.h.b16 %v650
    %v841 = vunpack.c.l.b16 %v651
    %v842 = vunpack.c.h.b16 %v651
    %v843 = vunpack.c.l.b16 %v652
    %v844 = vunpack.c.h.b16 %v652
    %v845 = vunpack.c.l.b16 %v653
    %v846 = vunpack.c.h.b16 %v653
    %v847 = vunpack.c.l.b16 %v654
    %v848 = vunpack.c.h.b16 %v654
    %v849 = vunpack.c.l.b16 %v655
    %v850 = vunpack.c.h.b16 %v655
    %v851 = vunpack.c.l.b16 %v656
    %v852 = vunpack.c.h.b16 %v656
    %v853 = vunpack.c.l.b16 %v657
    %v854 = vunpack.c.h.b16 %v657
    %v855 = vunpack.c.l.b16 %v658
    %v856 = vunpack.c.h.b16 %v658
    %v857 = vunpack.c.l.b16 %v659
    %v858 = vunpack.c.h.b16 %v659
    %v859 = vunpack.c.l.b16 %v660
    %v860 = vunpack.c.h.b16 %v660
    %v861 = vunpack.c.l.b16 %v661
    %v862 = vunpack.c.h.b16 %v661
    %v863 = vunpack.c.l.b16 %v662
    %v864 = vunpack.c.h.b16 %v662
    %v865 = vunpack.c.l.b16 %v663
    %v866 = vunpack.c.h.b16 %v663
    %v867 = vunpack.c.l.b16 %v664
    %v868 = vunpack.c.h.b16 %v664
    %v869 = vpack.c.b16 %v743, %v741
    %v870 = vpack.c.b16 %v744, %v742
    %v871 = vpack.c.b16 %v747, %v745
    %v872 = vpack.c.b16 %v748, %v746
    %v873 = vpack.c.b16 %v751, %v749
    %v874 = vpack.c.b16 %v752, %v750
    %v875 = vpack.c.b16 %v755, %v753
    %v876 = vpack.c.b16 %v756, %v754
    %v877 = vpack.c.b16 %v759, %v757
    %v878 = vpack.c.b16 %v760, %v758
    %v879 = vpack.c.b16 %v763, %v761
    %v880 = vpack.c.b16 %v764, %v762
    %v881 = vpack.c.b16 %v767, %v765
    %v882 = vpack.c.b16 %v768, %v766
    %v883 = vpack.c.b16 %v771, %v769
    %v884 = vpack.c.b16 %v772, %v770
    %v885 = vpack.c.b16 %v775, %v773
    %v886 = vpack.c.b16 %v776, %v774
    %v887 = vpack.c.b16 %v779, %v777
    %v888 = vpack.c.b16 %v780, %v778
    %v889 = vpack.c.b16 %v783, %v781
    %v890 = vpack.c.b16 %v784, %v782
    %v891 = vpack.c.b16 %v787, %v785
    %v892 = vpack.c.b16 %v788, %v786
    %v893 = vpack.c.b16 %v791, %v789
    %v894 = vpack.c.b16 %v792, %v790
    %v895 = vpack.c.b16 %v795, %v793
    %v896 = vpack.c.b16 %v796, %v794
    %v897 = vpack.c.b16 %v799, %v797
    %v898 = vpack.c.b16 %v800, %v798
    %v899 = vpack.c.b16 %v803, %v801
    %v900 = vpack.c.b16 %v804, %v802
    %v901 = vpack.c.b16 %v807, %v805
    %v902 = vpack.c.b16 %v808, %v806
    %v903 = vpack.c.b16 %v811, %v809
    %v904 = vpack.c.b16 %v812, %v810
    %v905 = vpack.c.b16 %v815, %v813
    %v906 = vpack.c.b16 %v816, %v814
    %v907 = vpack.c.b16 %v819, %v817
    %v908 = vpack.c.b16 %v820, %v818
    %v909 = vpack.c.b16 %v823, %v821
    %v910 = vpack.c.b16 %v824, %v822
    %v911 = vpack.c.b16 %v827, %v825
    %v912 = vpack.c.b16 %v828, %v826
    %v913 = vpack.c.b16 %v831, %v829
    %v914 = vpack.c.b16 %v832, %v830
    %v915 = vpack.c.b16 %v835, %v833
    %v916 = vpack.c.b16 %v836, %v834
    %v917 = vpack.c.b16 %v839, %v837
    %v918 = vpack.c.b16 %v840, %v838
    %v919 = vpack.c.b16 %v843, %v841
    %v920 = vpack.c.b16 %v844, %v842
    %v921 = vpack.c.b16 %v847, %v845
    %v922 = vpack.c.b16 %v848, %v846
    %v923 = vpack.c.b16 %v851, %v849
    %v924 = vpack.c.b16 %v852, %v850
    %v925 = vpack.c.b16 %v855, %v853
    %v926 = vpack.c.b16 %v856, %v854
    %v927 = vpack.c.b16 %v859, %v857
    %v928 = vpack.c.b16 %v860, %v858
    %v929 = vpack.c.b16 %v863, %v861
    %v930 = vpack.c.b16 %v864, %v862
    %v931 = vpack.c.b16 %v867, %v865
    %v932 = vpack.c.b16 %v868, %v866
    %997 = vmatprep.subr.bf16.mxu0 %v870
    %998 = vmatpush1.bf16.msra.mxu0 %v869
    %999 = vmatprep.subr.bf16.mxu0 %v872
    %1000 = vmatpush1.bf16.msra.mxu0 %v871
    %1001 = vmatprep.subr.bf16.mxu0 %v874
    %1002 = vmatpush1.bf16.msra.mxu0 %v873
    %1003 = vmatprep.subr.bf16.mxu0 %v876
    %1004 = vmatpush1.bf16.msra.mxu0 %v875
    %1005 = vmatprep.subr.bf16.mxu0 %v878
    %1006 = vmatpush1.bf16.msra.mxu0 %v877
    %1007 = vmatprep.subr.bf16.mxu0 %v880
    %1008 = vmatpush1.bf16.msra.mxu0 %v879
    %1009 = vmatprep.subr.bf16.mxu0 %v882
    %1010 = vmatpush1.bf16.msra.mxu0 %v881
    %1011 = vmatprep.subr.bf16.mxu0 %v884
    %1012 = vmatpush1.bf16.msra.mxu0 %v883
    %1013 = vmatprep.subr.bf16.mxu0 %v886
    %1014 = vmatpush1.bf16.msra.mxu0 %v885
    %1015 = vmatprep.subr.bf16.mxu0 %v888
    %1016 = vmatpush1.bf16.msra.mxu0 %v887
    %1017 = vmatprep.subr.bf16.mxu0 %v890
    %1018 = vmatpush1.bf16.msra.mxu0 %v889
    %1019 = vmatprep.subr.bf16.mxu0 %v892
    %1020 = vmatpush1.bf16.msra.mxu0 %v891
    %1021 = vmatprep.subr.bf16.mxu0 %v894
    %1022 = vmatpush1.bf16.msra.mxu0 %v893
    %1023 = vmatprep.subr.bf16.mxu0 %v896
    %1024 = vmatpush1.bf16.msra.mxu0 %v895
    %1025 = vmatprep.subr.bf16.mxu0 %v898
    %1026 = vmatpush1.bf16.msra.mxu0 %v897
    %1027 = vmatprep.subr.bf16.mxu0 %v900
    %1028 = vmatpush1.bf16.msra.mxu0 %v899
    %1029 = vmatprep.mubr.bf16.mxu0 %v598
    %1030 = vmatmul.mubr.bf16.gmra.mrb[0].mxu0 %v597
    %v1031 = vpop.f32.mrb[0].mxu0
    %v1032 = vadd.f32 %v670, %v1031
    %v1033 = vpop.f32.mrb[0].mxu0
    %v1034 = vadd.f32 %v674, %v1033
    %v1035 = vpop.f32.mrb[0].mxu0
    %v1036 = vadd.f32 %v670, %v1035
    %v1037 = vpop.f32.mrb[0].mxu0
    %v1038 = vadd.f32 %v674, %v1037
    %1039 = vdwg.mxu0
    %1040 = vmatprep.subr.bf16.mxu0 %v902
    %1041 = vmatpush1.bf16.msra.mxu0 %v901
    %1042 = vmatprep.subr.bf16.mxu0 %v904
    %1043 = vmatpush1.bf16.msra.mxu0 %v903
    %1044 = vmatprep.subr.bf16.mxu0 %v906
    %1045 = vmatpush1.bf16.msra.mxu0 %v905
    %1046 = vmatprep.subr.bf16.mxu0 %v908
    %1047 = vmatpush1.bf16.msra.mxu0 %v907
    %1048 = vmatprep.subr.bf16.mxu0 %v910
    %1049 = vmatpush1.bf16.msra.mxu0 %v909
    %1050 = vmatprep.subr.bf16.mxu0 %v912
    %1051 = vmatpush1.bf16.msra.mxu0 %v911
    %1052 = vmatprep.subr.bf16.mxu0 %v914
    %1053 = vmatpush1.bf16.msra.mxu0 %v913
    %1054 = vmatprep.subr.bf16.mxu0 %v916
    %1055 = vmatpush1.bf16.msra.mxu0 %v915
    %1056 = vmatprep.subr.bf16.mxu0 %v918
    %1057 = vmatpush1.bf16.msra.mxu0 %v917
    %1058 = vmatprep.subr.bf16.mxu0 %v920
    %1059 = vmatpush1.bf16.msra.mxu0 %v919
    %1060 = vmatprep.subr.bf16.mxu0 %v922
    %1061 = vmatpush1.bf16.msra.mxu0 %v921
    %1062 = vmatprep.subr.bf16.mxu0 %v924
    %1063 = vmatpush1.bf16.msra.mxu0 %v923
    %1064 = vmatprep.subr.bf16.mxu0 %v926
    %1065 = vmatpush1.bf16.msra.mxu0 %v925
    %1066 = vmatprep.subr.bf16.mxu0 %v928
    %1067 = vmatpush1.bf16.msra.mxu0 %v927
    %1068 = vmatprep.subr.bf16.mxu0 %v930
    %1069 = vmatpush1.bf16.msra.mxu0 %v929
    %1070 = vmatprep.subr.bf16.mxu0 %v932
    %1071 = vmatpush1.bf16.msra.mxu0 %v931
    %1072 = vmatprep.mubr.bf16.mxu0 %v600
    %1073 = vmatmul.mubr.bf16.gmra.mrb[0].mxu0 %v599
    %v1074 = vpop.f32.mrb[0].mxu0
    %v1075 = vadd.f32 %v1032, %v1074
    %v1076 = vpop.f32.mrb[0].mxu0
    %v1077 = vadd.f32 %v1034, %v1076
    %v1078 = vpop.f32.mrb[0].mxu0
    %v1079 = vadd.f32 %v1036, %v1078
    %v1080 = vpop.f32.mrb[0].mxu0
    %v1081 = vadd.f32 %v1038, %v1080
    %1082 = vdwg.mxu0
    %v1083 = vmul.f32 %v1075, 0.2
    %v1084 = vmul.f32 %v1077, 0.2
    %v1085 = vmul.f32 %v1079, 0.2
    %v1086 = vmul.f32 %v1081, 0.2
    %v1087 = vmax.f32 %v1075, %v1083
    %v1088 = vmax.f32 %v1077, %v1084
    %v1089 = vmax.f32 %v1079, %v1085
    %v1090 = vmax.f32 %v1081, %v1086
    %v1091 = vld [vmem:[%s5] sm:$0x3]
    %v1093 = vlaneseq
    %v1094 = vshrl.u32 %v1093, 7
    %v1095 = vsub.s32 0, %v1094
    %v1096 = vrot.slane %v1091, %v1095
    %v1097 = vlaneseq
    %v1098 = vshrl.u32 %v1097, 7
    %v1099 = vsub.s32 1, %v1098
    %v1100 = vrot.slane %v1091, %v1099
    %v1103 = vmul.f32 %v1087, %v1096
    %v1104 = vmul.f32 %v1088, %v1100
    %v1105 = vmul.f32 %v1089, %v1096
    %v1106 = vmul.f32 %v1090, %v1100
    %v1107 = vadd.f32 %v1103, %v1104
    %1108 = vadd.xlane.f32.xlu0 %v1107
    %v1109 = vpop.xlane.xlu0 %1108
    %v1110 = vadd.f32 %v1105, %v1106
    %1111 = vadd.xlane.f32.xlu0 %v1110
    %v1112 = vpop.xlane.xlu0 %1111
    %v1113 = vld [vmem:[#allocation3] sm:$0x1]
    %1115 = vset.pattern.permute.xlu0 0
    %1116 = vperm.xlu0 %1115, %v1113
    %v1117 = vpop.permute.xlu0 %1116
    %v1119 = vlaneseq
    %v1120 = vshrl.u32 %v1119, 7
    %v1121 = vsub.s32 0, %v1120
    %v1122 = vrot.slane %v1117, %v1121
    %v1123 = vadd.f32 %v1109, %v1122
    %v1124 = vadd.f32 %v1112, %v1122
    %v1127 = vlaneseq
    %v1128 = vand.u32 %v1127, 127
    %v1129 = vlaneseq
    %v1130 = vshrl.u32 %v1129, 7
    %v1131 = vsub.s32 %v1128, %v1130
    %v1132 = vrot.slane %v1123, %v1131
    %v1133 = vadd.s32 %v1128, 4294967288
    %v1134 = vlaneseq
    %v1135 = vshrl.u32 %v1134, 7
    %v1136 = vsub.s32 %v1133, %v1135
    %v1137 = vrot.slane %v1124, %v1136
    %vm1138 = vcmask 130112
    %v1139 = vsel %vm1138, %v1137, %v1132
    %vm1140 = vcmask 1042434
    %v1141 = vsel %vm1140, %v1139, %v1139
    %vm1142 = vcmask 1043459
    %v1143 = vsel %vm1142, %v1139, %v1141
    %vm1144 = vcmask 1044484
    %v1145 = vsel %vm1144, %v1139, %v1143
    %vm1146 = vcmask 1045509
    %v1147 = vsel %vm1146, %v1139, %v1145
    %vm1148 = vcmask 1046534
    %v1149 = vsel %vm1148, %v1139, %v1147
    %vm1150 = vcmask 1047559
    %v1151 = vsel %vm1150, %v1139, %v1149
    %vm1153 = vcmask 130048
    %1154 = vst.msk [vmem:[%s7] sm:$0xff] %vm1153, %v1151
  $region37: #{discriminator_forward.1} parent=0 // pred_fallthru
    _
  // Predicated region
  $region38: #{discriminator_forward.1} parent=0 // pred_check
    _
  $region39: #{discriminator_forward.1} parent=0 // pred_check_branch
    %1156 = sbr.rel (0) target = $region41
  $region40: #{discriminator_forward.1} parent=0 // pred_region
    _
  $region41: #{discriminator_forward.1} parent=0 // pred_fallthru
    _
  // Predicated region
  $region42: #{discriminator_forward.1} parent=0 // pred_check
    _
  $region43: #{discriminator_forward.1} parent=0 // pred_check_branch
    %1158 = sbr.rel (0) target = $region45
  $region44: #{discriminator_forward.1} parent=0 // pred_region
    _
  $region45: #{discriminator_forward.1} parent=0 // pred_fallthru
    _

</llo_original>
